<compile_context>
chip_gen: v5e
topology: v5e:2x2
jax: 0.10.0
libtpu: 0.0.40
codegen_flags: <defaults>
</compile_context>

<pallas_src>
import jax
import jax.numpy as jnp
from jax.experimental import pallas as pl
from jax.experimental.pallas import tpu as pltpu


def _round_up(x, m):
    return ((x + m - 1) // m) * m


def _score_tile_kernel(a_ref, b_ref, w2_ref, b2_ref, wd_ref, bd_ref, p0_ref):
    a = a_ref[...]                            # (TI, Hp) f32, b1 already folded in
    bmat = b_ref[...]                         # (TJ, Hp) f32
    ti, hp = a.shape
    tj = bmat.shape[0]
    qp = w2_ref.shape[1]

    # L1 (virtual concat) + ReLU; the f32->bf16 cast is fused so only the bf16
    # z1 tile is materialized in VMEM.
    z1 = jnp.maximum(a[:, None, :] + bmat[None, :, :], 0.0).astype(jnp.bfloat16)
    z1 = z1.reshape(ti * tj, hp)

    # L2 + ReLU: bf16 operands, f32 accumulation on the MXU.
    z2 = jnp.dot(z1, w2_ref[...], preferred_element_type=jnp.float32)
    z2 = jnp.maximum(z2 + b2_ref[...], 0.0)                          # (TI*TJ, Qp)

    # L3 + softmax over 2 classes == sigmoid of the logit difference.
    wd = wd_ref[...]                                                 # (1, Qp)
    d = jnp.sum(z2.reshape(ti, tj, qp) * wd[None, :, :], axis=-1)    # (TI, TJ)
    d = d + bd_ref[0]
    e = jnp.exp(-jnp.abs(d))
    pmax = jnp.minimum(pl.reciprocal(1.0 + e, approx=True), 1.0)     # clamp: p1 >= 0
    p0_ref[...] = jnp.where(d >= 0.0, pmax, 1.0 - pmax)


def _vmem_capacity_bytes():
    try:
        return int(pltpu.get_tpu_info().vmem_capacity_bytes)
    except Exception:
        return 64 << 20                       # conservative fallback (v7x-sized)


def _budgets(vmem_cap):
    if vmem_cap <= (64 << 20):                # v7x-class: 64 MiB physical VMEM
        return 22 << 20, 40 << 20             # (intermediate budget, vmem_limit cap)
    return 56 << 20, 96 << 20                 # v5e / v6e: 128 MiB physical VMEM


def _choose_tiles(B, half_p, quarter_p, inter_budget):
    # j (column / lane) tile: lane-dense multiples of 128 for large B; a single
    # padded-to-8 block (masked stores are negligible) for tiny B.
    if B >= 256:
        tile_j = 256
    elif B >= 128:
        tile_j = 128
    else:
        tile_j = _round_up(B, 8)
    n_j = pl.cdiv(B, tile_j)
    B_j = n_j * tile_j

    # i (row / sublane) tile sized against the per-step intermediate budget
    # (f32 broadcast temp + bf16 z1 + f32 z2 + epilogue, counted conservatively).
    per_i = tile_j * (half_p * 6 + quarter_p * 4 + 24)
    t = int(inter_budget // max(per_i, 1))
    t = max(8, min(t, _round_up(B, 8)))
    t = (t // 8) * 8
    n_i = pl.cdiv(B, t)
    # v7x megacore: ensure >= 2 total grid steps when B permits.
    if n_i * n_j < 2 and B > 8:
        n_i = 2
    tile_i = _round_up(pl.cdiv(B, n_i), 8)
    B_i = n_i * tile_i
    return tile_i, tile_j, B_i, B_j, n_i, n_j


def _vmem_limit(tile_i, tile_j, half_p, quarter_p, limit_cap):
    inter = tile_i * tile_j * (half_p * 6 + quarter_p * 4 + 24)
    bufs = 2 * (tile_i * half_p * 4 + tile_j * half_p * 4
                + half_p * quarter_p * 2 + 2 * quarter_p * 4
                + tile_i * tile_j * 4)
    est = inter + bufs + (2 << 20)
    return int(min(max(est, 8 << 20), limit_cap))


@jax.jit
def score_forward(x, params):
    w_in, b_in, w1, b1, w2, b2, w3, b3 = params
    B, dim = x.shape
    half, quarter = dim // 2, dim // 4
    half_p = _round_up(half, 128)             # MXU-friendly K
    quarter_p = _round_up(quarter, 128)       # MXU-friendly N

    inter_budget, limit_cap = _budgets(_vmem_capacity_bytes())
    tile_i, tile_j, B_i, B_j, n_i, n_j = _choose_tiles(B, half_p, quarter_p, inter_budget)

    # ---- O(B*dim) prework in plain XLA (hoisted out of the gridded kernel) ----
    h = x @ w_in + b_in                                # fc_in
    f1, f2 = h[:, :half], h[:, half:]
    a = f1 @ w1[:half, :] + b1                         # L1 "f1 half", b1 folded here
    bb = f2 @ w1[half:, :]                             # L1 "f2 half"

    # Zero padding: exact through relu / the wd reduction; rows padded so the
    # (i, j) grid divides evenly (padded rows/cols sliced off afterwards).
    a_p = jnp.pad(a, ((0, B_i - B), (0, half_p - half)))
    bb_p = jnp.pad(bb, ((0, B_j - B), (0, half_p - half)))
    w2_p = jnp.pad(w2, ((0, half_p - half), (0, quarter_p - quarter))).astype(jnp.bfloat16)
    b2_p = jnp.pad(b2, ((0, 0), (0, quarter_p - quarter)))
    wd_p = jnp.pad((w3[:, 0] - w3[:, 1]).reshape(1, quarter),
                   ((0, 0), (0, quarter_p - quarter)))
    bd = (b3[:, 0] - b3[:, 1]).reshape(1)              # scalar -> SMEM

    p0 = pl.pallas_call(
        _score_tile_kernel,
        out_shape=jax.ShapeDtypeStruct((B_i, B_j), jnp.float32),
        grid_spec=pltpu.PrefetchScalarGridSpec(
            num_scalar_prefetch=0,
            grid=(n_i, n_j),
            in_specs=[
                pl.BlockSpec((tile_i, half_p), lambda i, j: (i, 0)),      # a: tiled over i
                pl.BlockSpec((tile_j, half_p), lambda i, j: (j, 0)),      # bb: tiled over j
                pl.BlockSpec((half_p, quarter_p), lambda i, j: (0, 0)),   # w2 (bf16): resident
                pl.BlockSpec((1, quarter_p), lambda i, j: (0, 0)),        # b2: resident
                pl.BlockSpec((1, quarter_p), lambda i, j: (0, 0)),        # wd: resident
                pl.BlockSpec(memory_space=pltpu.MemorySpace.SMEM),        # bd: scalar in SMEM
            ],
            out_specs=pl.BlockSpec((tile_i, tile_j), lambda i, j: (i, j)),  # lane-dense plane
        ),
        compiler_params=pltpu.CompilerParams(
            dimension_semantics=("parallel", "parallel"),
            vmem_limit_bytes=_vmem_limit(tile_i, tile_j, half_p, quarter_p, limit_cap),
        ),
    )(a_p, bb_p, w2_p, b2_p, wd_p, bd)

    p0 = p0[:B, :B]
    return jnp.stack([p0, 1.0 - p0], axis=-1)          # (B, B, 2)


def init_params(key, dim):
    ks = jax.random.split(key, 8)

    def lin(kw, kb, fan_in, fan_out):
        bound = 1.0 / jnp.sqrt(fan_in)
        w = jax.random.uniform(kw, (fan_in, fan_out), jnp.float32, -bound, bound)
        b = jax.random.uniform(kb, (1, fan_out), jnp.float32, -bound, bound)
        return w, b

    w_in, b_in = lin(ks[0], ks[1], dim, dim)
    w1, b1 = lin(ks[2], ks[3], dim, dim // 2)
    w2, b2 = lin(ks[4], ks[5], dim // 2, dim // 4)
    w3, b3 = lin(ks[6], ks[7], dim // 4, 2)
    return (w_in, b_in, w1, b1, w2, b2, w3, b3)


def score_reference(x, params):
    """Pure-JAX f32 reference mirroring the PyTorch forward exactly."""
    w_in, b_in, w1, b1, w2, b2, w3, b3 = params
    B, C = x.shape
    h = x @ w_in + b_in
    f1, f2 = h[:, :C // 2], h[:, C // 2:]
    f = jnp.concatenate(
        [jnp.repeat(f1[:, None, :], B, axis=1),
         jnp.repeat(f2[None, :, :], B, axis=0)], axis=-1)      # (B, B, C)
    z1 = jax.nn.relu(f @ w1 + b1)
    z2 = jax.nn.relu(z1 @ w2 + b2)
    logits = z2 @ w3 + b3
    return jax.nn.softmax(logits, axis=-1)


def _check(B, dim, key):
    k_x, k_p = jax.random.split(key)
    x = jax.random.normal(k_x, (B, dim), jnp.float32)
    params = init_params(k_p, dim)
    out = jax.block_until_ready(score_forward(x, params))
    ref = score_reference(x, params)
    assert out.shape == (B, B, 2)
    # bf16 L2 operands + approx reciprocal -> bf16-appropriate tolerance.
    assert jnp.allclose(out, ref, atol=1e-2, rtol=0.0), float(jnp.max(jnp.abs(out - ref)))
    assert jnp.allclose(out.sum(-1), 1.0, atol=1e-3)
    assert float(out.min()) >= 0.0 and float(out.max()) <= 1.0


if __name__ == "__main__":
    key = jax.random.PRNGKey(0)
    k0, k1 = jax.random.split(key)
    _check(8, 32, k0)     # single-step grid, tiny shape from the module spec
    _check(20, 64, k1)    # multi-step (i) grid + row/column padding path
    print("KERNEL_OK")
</pallas_src>

<mosaic_0001>
module attributes {stable_mosaic.version = 11 : i64} {
  func.func @_score_tile_kernel(%arg0: i32, %arg1: i32, %arg2: memref<8x128xf32, #tpu.memory_space<vmem>>, %arg3: memref<8x128xf32, #tpu.memory_space<vmem>>, %arg4: memref<128x128xbf16, #tpu.memory_space<vmem>>, %arg5: memref<1x128xf32, #tpu.memory_space<vmem>>, %arg6: memref<1x128xf32, #tpu.memory_space<vmem>>, %arg7: memref<1xf32, #tpu.memory_space<smem>>, %arg8: memref<8x8xf32, #tpu.memory_space<vmem>>) attributes {dimension_semantics = [#tpu.dimension_semantics<parallel>, #tpu.dimension_semantics<parallel>], iteration_bounds = array<i64: 1, 1>, scalar_prefetch = 0 : i64, scratch_operands = 0 : i64, tpu.core_type = #tpu.core_type<tc>, window_params = [{transform_indices = @transform_0, window_bounds = array<i64: 8, 128>}, {transform_indices = @transform_1, window_bounds = array<i64: 8, 128>}, {pipeline_mode = #tpu.pipeline_mode<synchronous>, transform_indices = @transform_2, window_bounds = array<i64: 128, 128>}, {pipeline_mode = #tpu.pipeline_mode<synchronous>, transform_indices = @transform_3, window_bounds = array<i64: 1, 128>}, {pipeline_mode = #tpu.pipeline_mode<synchronous>, transform_indices = @transform_4, window_bounds = array<i64: 1, 128>}, {transform_indices = @transform_5, window_bounds = array<i64: 1>}, {transform_indices = @transform_6, window_bounds = array<i64: 8, 8>}]} {
    %c0 = arith.constant 0 : index
    %c0_0 = arith.constant 0 : index
    %0 = vector.load %arg2[%c0, %c0_0] : memref<8x128xf32, #tpu.memory_space<vmem>>, vector<8x128xf32>
    %c0_1 = arith.constant 0 : index
    %c0_2 = arith.constant 0 : index
    %1 = vector.load %arg3[%c0_1, %c0_2] : memref<8x128xf32, #tpu.memory_space<vmem>>, vector<8x128xf32>
    %2 = vector.shape_cast %0 : vector<8x128xf32> to vector<8x1x128xf32>
    %3 = vector.shape_cast %1 : vector<8x128xf32> to vector<1x8x128xf32>
    %4 = vector.broadcast %2 : vector<8x1x128xf32> to vector<8x8x128xf32>
    %5 = vector.broadcast %3 : vector<1x8x128xf32> to vector<8x8x128xf32>
    %6 = arith.addf %4, %5 : vector<8x8x128xf32>
    %cst = arith.constant 0.000000e+00 : f32
    %7 = vector.broadcast %cst : f32 to vector<8x8x128xf32>
    %8 = arith.maximumf %6, %7 : vector<8x8x128xf32>
    %9 = arith.truncf %8 : vector<8x8x128xf32> to vector<8x8x128xbf16>
    %10 = vector.shape_cast %9 : vector<8x8x128xbf16> to vector<64x128xbf16>
    %c0_3 = arith.constant 0 : index
    %c0_4 = arith.constant 0 : index
    %11 = vector.load %arg4[%c0_3, %c0_4] : memref<128x128xbf16, #tpu.memory_space<vmem>>, vector<128x128xbf16>
    %cst_5 = arith.constant dense<0.000000e+00> : vector<64x128xf32>
    %12 = tpu.matmul %10, %11, %cst_5 {dimension_numbers = #tpu.dot_dimension_numbers<[1], [0], [0], [1], [0, 0, 1, 1], [], []>} : vector<64x128xbf16>, vector<128x128xbf16>, vector<64x128xf32> -> vector<64x128xf32>
    %c0_6 = arith.constant 0 : index
    %c0_7 = arith.constant 0 : index
    %13 = vector.load %arg5[%c0_6, %c0_7] : memref<1x128xf32, #tpu.memory_space<vmem>>, vector<1x128xf32>
    %14 = vector.broadcast %13 : vector<1x128xf32> to vector<64x128xf32>
    %15 = arith.addf %12, %14 : vector<64x128xf32>
    %cst_8 = arith.constant 0.000000e+00 : f32
    %16 = vector.broadcast %cst_8 : f32 to vector<64x128xf32>
    %17 = arith.maximumf %15, %16 : vector<64x128xf32>
    %c0_9 = arith.constant 0 : index
    %c0_10 = arith.constant 0 : index
    %18 = vector.load %arg6[%c0_9, %c0_10] : memref<1x128xf32, #tpu.memory_space<vmem>>, vector<1x128xf32>
    %19 = vector.shape_cast %17 : vector<64x128xf32> to vector<8x8x128xf32>
    %20 = vector.shape_cast %18 : vector<1x128xf32> to vector<1x1x128xf32>
    %21 = vector.broadcast %20 : vector<1x1x128xf32> to vector<8x8x128xf32>
    %22 = arith.mulf %19, %21 : vector<8x8x128xf32>
    %cst_11 = arith.constant dense<0.000000e+00> : vector<8x8xf32>
    %23 = vector.multi_reduction <add>, %22, %cst_11 [2] : vector<8x8x128xf32> to vector<8x8xf32>
    %c0_12 = arith.constant 0 : index
    %24 = memref.load %arg7[%c0_12] : memref<1xf32, #tpu.memory_space<smem>>
    %25 = vector.broadcast %24 : f32 to vector<8x8xf32>
    %26 = arith.addf %23, %25 : vector<8x8xf32>
    %27 = math.absf %26 : vector<8x8xf32>
    %cst_13 = arith.constant 0.000000e+00 : f32
    %28 = vector.broadcast %cst_13 : f32 to vector<8x8xf32>
    %29 = arith.subf %28, %27 : vector<8x8xf32>
    %30 = math.exp %29 : vector<8x8xf32>
    %cst_14 = arith.constant 1.000000e+00 : f32
    %31 = vector.broadcast %cst_14 : f32 to vector<8x8xf32>
    %32 = arith.addf %31, %30 : vector<8x8xf32>
    %33 = tpu.reciprocal %32 {approx = true} : vector<8x8xf32> -> vector<8x8xf32>
    %cst_15 = arith.constant 1.000000e+00 : f32
    %34 = vector.broadcast %cst_15 : f32 to vector<8x8xf32>
    %35 = arith.minimumf %33, %34 : vector<8x8xf32>
    %cst_16 = arith.constant 0.000000e+00 : f32
    %36 = vector.broadcast %cst_16 : f32 to vector<8x8xf32>
    %37 = arith.cmpf oge, %26, %36 : vector<8x8xf32>
    %cst_17 = arith.constant 1.000000e+00 : f32
    %38 = vector.broadcast %cst_17 : f32 to vector<8x8xf32>
    %39 = arith.subf %38, %35 : vector<8x8xf32>
    %40 = arith.select %37, %35, %39 : vector<8x8xi1>, vector<8x8xf32>
    %c0_18 = arith.constant 0 : index
    %c0_19 = arith.constant 0 : index
    %41 = vector.load %arg8[%c0_18, %c0_19] : memref<8x8xf32, #tpu.memory_space<vmem>>, vector<8x8xf32>
    tpu.vector_store %arg8[%c0_18, %c0_19], %40 {strides = array<i32>} : memref<8x8xf32, #tpu.memory_space<vmem>>, vector<8x8xf32>,
    return
  }
  func.func @transform_0(%arg0: i32, %arg1: i32) -> (i32, i32) {
    %c0_i32 = arith.constant 0 : i32
    %c0_i32_0 = arith.constant 0 : i32
    return %arg0, %c0_i32 : i32, i32
  }
  func.func @transform_1(%arg0: i32, %arg1: i32) -> (i32, i32) {
    %c0_i32 = arith.constant 0 : i32
    %c0_i32_0 = arith.constant 0 : i32
    return %arg1, %c0_i32 : i32, i32
  }
  func.func @transform_2(%arg0: i32, %arg1: i32) -> (i32, i32) {
    %c0_i32 = arith.constant 0 : i32
    %c0_i32_0 = arith.constant 0 : i32
    %c0_i32_1 = arith.constant 0 : i32
    return %c0_i32, %c0_i32_0 : i32, i32
  }
  func.func @transform_3(%arg0: i32, %arg1: i32) -> (i32, i32) {
    %c0_i32 = arith.constant 0 : i32
    %c0_i32_0 = arith.constant 0 : i32
    %c0_i32_1 = arith.constant 0 : i32
    return %c0_i32, %c0_i32_0 : i32, i32
  }
  func.func @transform_4(%arg0: i32, %arg1: i32) -> (i32, i32) {
    %c0_i32 = arith.constant 0 : i32
    %c0_i32_0 = arith.constant 0 : i32
    %c0_i32_1 = arith.constant 0 : i32
    return %c0_i32, %c0_i32_0 : i32, i32
  }
  func.func @transform_5(%arg0: i32, %arg1: i32) -> i32 {
    %c0_i32 = arith.constant 0 : i32
    %c0_i32_0 = arith.constant 0 : i32
    return %c0_i32 : i32
  }
  func.func @transform_6(%arg0: i32, %arg1: i32) -> (i32, i32) {
    %c0_i32 = arith.constant 0 : i32
    return %arg0, %arg1 : i32, i32
  }
}

</mosaic_0001>

<llo_original>
// kernel: score_forward.1
$region0: #{score_forward.1}
  #allocation0 [shape = 'u32[]', space=smem, size = 0x4, offset = 0x4, fixed_abs, tag = 'smem constant byte address 0x4 - core index']
  #allocation1 [shape = 'u32[72,128]{1,0:T(1,128)}', space=vmem, size = 0x9000, scoped, tag = 'internal scratch']
  #allocation2 [shape = 'f32[1]{0:T(128)S(6)}', space=smem, size = 0x200, scoped, tag = 'scoped memory for score_forward.1']
  %s0 = inlined_call_operand.vmem [shape: f32[8,128], index: 0, kind: input, shape index: {}]
  %s1 = inlined_call_operand.vmem [shape: f32[8,128], index: 1, kind: input, shape index: {}]
  %s2 = inlined_call_operand.vmem [shape: bf16[128,128], index: 2, kind: input, shape index: {}]
  %s3 = inlined_call_operand.vmem [shape: f32[1,128], index: 3, kind: input, shape index: {}]
  %s4 = inlined_call_operand.vmem [shape: f32[1,128], index: 4, kind: input, shape index: {}]
  %s5 = inlined_call_operand.<no memory space> [shape: f32[1], index: 5, kind: input, shape index: {}]
  %s6 = inlined_call_operand.vmem [shape: f32[8,8], index: 6, kind: output, shape index: {}]
  %s7 = sld [smem:[#allocation0]]
  $region34: #{score_forward.1} parent=0
    _
  %s9 = ssub.s32 1, %s7
  %s10 = scalar_select 0, %s9, %s7
  %11 = sst [smem:[#allocation2]] %s5
  // Predicated region
  $region2: #{score_forward.1} parent=0 // pred_check
    _
  $region3: #{score_forward.1} parent=0 // pred_check_branch
    %13 = sbr.rel (0) target = $region5
  $region4: #{score_forward.1} parent=0 // pred_region
    _
  $region5: #{score_forward.1} parent=0 // pred_fallthru
    _
  // Predicated region
  $region6: #{score_forward.1} parent=0 // pred_check
    _
  $region7: #{score_forward.1} parent=0 // pred_check_branch
    %15 = sbr.rel (0) target = $region9
  $region8: #{score_forward.1} parent=0 // pred_region
    _
  $region9: #{score_forward.1} parent=0 // pred_fallthru
    _
  // Predicated region
  $region10: #{score_forward.1} parent=0 // pred_check
    _
  $region11: #{score_forward.1} parent=0 // pred_check_branch
    %17 = sbr.rel (0) target = $region13
  $region12: #{score_forward.1} parent=0 // pred_region
    _
  $region13: #{score_forward.1} parent=0 // pred_fallthru
    _
  // Predicated region
  $region14: #{score_forward.1} parent=0 // pred_check
    _
  $region15: #{score_forward.1} parent=0 // pred_check_branch
    %19 = sbr.rel (0) target = $region17
  $region16: #{score_forward.1} parent=0 // pred_region
    _
  $region17: #{score_forward.1} parent=0 // pred_fallthru
    _
  // Predicated region
  $region18: #{score_forward.1} parent=0 // pred_check
    _
  $region19: #{score_forward.1} parent=0 // pred_check_branch
    %21 = sbr.rel (0) target = $region21
  $region20: #{score_forward.1} parent=0 // pred_region
    _
  $region21: #{score_forward.1} parent=0 // pred_fallthru
    _
  // Predicated region
  $region22: #{score_forward.1} parent=0 // pred_check
    _
  $region23: #{score_forward.1} parent=0 // pred_check_branch
    %23 = sbr.rel (0) target = $region25
  $region24: #{score_forward.1} parent=0 // pred_region
    _
  $region25: #{score_forward.1} parent=0 // pred_fallthru
    _
  %v24 = vld [vmem:[%s0] sm:$0xff]
  %v25 = vld [vmem:[%s1] sm:$0xff]
  %v27 = vrot.slane %v24, 1
  %v28 = vrot.slane %v24, 2
  %v29 = vrot.slane %v24, 3
  %v30 = vrot.slane %v24, 4
  %v31 = vrot.slane %v24, 5
  %v32 = vrot.slane %v24, 6
  %v33 = vrot.slane %v24, 7
  %v34 = vperm.slane %v24, 0
  %v35 = vperm.slane %v27, 0
  %v36 = vperm.slane %v28, 0
  %v37 = vperm.slane %v29, 0
  %v38 = vperm.slane %v30, 0
  %v39 = vperm.slane %v31, 0
  %v40 = vperm.slane %v32, 0
  %v41 = vperm.slane %v33, 0
  %v50 = vadd.f32 %v34, %v25
  %v51 = vadd.f32 %v35, %v25
  %v52 = vadd.f32 %v36, %v25
  %v53 = vadd.f32 %v37, %v25
  %v54 = vadd.f32 %v38, %v25
  %v55 = vadd.f32 %v39, %v25
  %v56 = vadd.f32 %v40, %v25
  %v57 = vadd.f32 %v41, %v25
  %v58 = vmax.f32 %v50, 0.0
  %v59 = vmax.f32 %v51, 0.0
  %v60 = vmax.f32 %v52, 0.0
  %v61 = vmax.f32 %v53, 0.0
  %v62 = vmax.f32 %v54, 0.0
  %v63 = vmax.f32 %v55, 0.0
  %v64 = vmax.f32 %v56, 0.0
  %v65 = vmax.f32 %v57, 0.0
  %v66 = vpack.c.bf16 %v58, %v58
  %v67 = vpack.c.bf16 %v59, %v59
  %v68 = vpack.c.bf16 %v60, %v60
  %v69 = vpack.c.bf16 %v61, %v61
  %v70 = vpack.c.bf16 %v62, %v62
  %v71 = vpack.c.bf16 %v63, %v63
  %v72 = vpack.c.bf16 %v64, %v64
  %v73 = vpack.c.bf16 %v65, %v65
  %v74 = vld [vmem:[%s2] sm:$0xf]
  %v75 = vld [vmem:[%s2 + $0x4] sm:$0xf]
  %v76 = vld [vmem:[%s2 + $0x8] sm:$0xf]
  %v77 = vld [vmem:[%s2 + $0xc] sm:$0xf]
  %v78 = vld [vmem:[%s2 + $0x10] sm:$0xf]
  %v79 = vld [vmem:[%s2 + $0x14] sm:$0xf]
  %v80 = vld [vmem:[%s2 + $0x18] sm:$0xf]
  %v81 = vld [vmem:[%s2 + $0x1c] sm:$0xf]
  %v82 = vld [vmem:[%s2 + $0x20] sm:$0xf]
  %v83 = vld [vmem:[%s2 + $0x24] sm:$0xf]
  %v84 = vld [vmem:[%s2 + $0x28] sm:$0xf]
  %v85 = vld [vmem:[%s2 + $0x2c] sm:$0xf]
  %v86 = vld [vmem:[%s2 + $0x30] sm:$0xf]
  %v87 = vld [vmem:[%s2 + $0x34] sm:$0xf]
  %v88 = vld [vmem:[%s2 + $0x38] sm:$0xf]
  %v89 = vld [vmem:[%s2 + $0x3c] sm:$0xf]
  %v90 = vld [vmem:[%s3] sm:$0x1]
  %v92 = vperm.slane %v90, 0
  %v102 = vunpack.c.l.b16 %v66
  %v103 = vunpack.c.l.b16 %v67
  %v104 = vunpack.c.l.b16 %v68
  %v105 = vunpack.c.l.b16 %v69
  %v106 = vunpack.c.l.b16 %v70
  %v107 = vunpack.c.l.b16 %v71
  %v108 = vunpack.c.l.b16 %v72
  %v109 = vunpack.c.l.b16 %v73
  %v110 = vpack.c.b16 %v103, %v102
  %v111 = vpack.c.b16 %v105, %v104
  %v112 = vpack.c.b16 %v107, %v106
  %v113 = vpack.c.b16 %v109, %v108
  %v134 = vunpack.c.l.b16 %v74
  %v135 = vunpack.c.l.b16 %v75
  %v136 = vunpack.c.l.b16 %v76
  %v137 = vunpack.c.l.b16 %v77
  %v138 = vunpack.c.l.b16 %v78
  %v139 = vunpack.c.l.b16 %v79
  %v140 = vunpack.c.l.b16 %v80
  %v141 = vunpack.c.l.b16 %v81
  %v142 = vunpack.c.l.b16 %v82
  %v143 = vunpack.c.l.b16 %v83
  %v144 = vunpack.c.l.b16 %v84
  %v145 = vunpack.c.l.b16 %v85
  %v146 = vunpack.c.l.b16 %v86
  %v147 = vunpack.c.l.b16 %v87
  %v148 = vunpack.c.l.b16 %v88
  %v149 = vunpack.c.l.b16 %v89
  %v150 = vpack.c.b16 %v135, %v134
  %v151 = vpack.c.b16 %v137, %v136
  %v152 = vpack.c.b16 %v139, %v138
  %v153 = vpack.c.b16 %v141, %v140
  %v154 = vpack.c.b16 %v143, %v142
  %v155 = vpack.c.b16 %v145, %v144
  %v156 = vpack.c.b16 %v147, %v146
  %v157 = vpack.c.b16 %v149, %v148
  %166 = vmatpush.bf16.msra.mxu0 %v157
  %167 = vmatpush.bf16.msra.mxu0 %v156
  %168 = vmatpush.bf16.msra.mxu0 %v155
  %169 = vmatpush.bf16.msra.mxu0 %v154
  %170 = vmatpush.bf16.msra.mxu0 %v153
  %171 = vmatpush.bf16.msra.mxu0 %v152
  %172 = vmatpush.bf16.msra.mxu0 %v151
  %173 = vmatpush.bf16.msra.mxu0 %v150
  %174 = vmatmul.bf16.gmra.mxu0 %v110
  %v175 = vpop.f32.mrf.mxu0
  %v176 = vadd.f32 %v92, %v175
  %v177 = vpop.f32.mrf.mxu0
  %v178 = vadd.f32 %v92, %v177
  %179 = vmatmul.bf16.gmra.mxu0 %v111
  %v180 = vpop.f32.mrf.mxu0
  %v181 = vadd.f32 %v92, %v180
  %v182 = vpop.f32.mrf.mxu0
  %v183 = vadd.f32 %v92, %v182
  %184 = vmatmul.bf16.gmra.mxu0 %v112
  %v185 = vpop.f32.mrf.mxu0
  %v186 = vadd.f32 %v92, %v185
  %v187 = vpop.f32.mrf.mxu0
  %v188 = vadd.f32 %v92, %v187
  %189 = vmatmul.bf16.gmra.mxu0 %v113
  %v190 = vpop.f32.mrf.mxu0
  %v191 = vadd.f32 %v92, %v190
  %v192 = vpop.f32.mrf.mxu0
  %v193 = vadd.f32 %v92, %v192
  %194 = vdwg.mxu0
  %v195 = vmax.f32 %v176, 0.0
  %v196 = vmax.f32 %v178, 0.0
  %v197 = vmax.f32 %v181, 0.0
  %v198 = vmax.f32 %v183, 0.0
  %v199 = vmax.f32 %v186, 0.0
  %v200 = vmax.f32 %v188, 0.0
  %v201 = vmax.f32 %v191, 0.0
  %v202 = vmax.f32 %v193, 0.0
  %v203 = vld [vmem:[%s4] sm:$0x1]
  %v205 = vperm.slane %v203, 0
  %v207 = vmul.f32 %v195, %v205
  %v208 = vmul.f32 %v196, %v205
  %v209 = vmul.f32 %v197, %v205
  %v210 = vmul.f32 %v198, %v205
  %v211 = vmul.f32 %v199, %v205
  %v212 = vmul.f32 %v200, %v205
  %v213 = vmul.f32 %v201, %v205
  %v214 = vmul.f32 %v202, %v205
  %215 = vadd.xlane.f32.xlu0 %v207
  %v216 = vpop.xlane.xlu0 %215
  %217 = vadd.xlane.f32.xlu0 %v208
  %v218 = vpop.xlane.xlu0 %217
  %219 = vadd.xlane.f32.xlu0 %v209
  %v220 = vpop.xlane.xlu0 %219
  %221 = vadd.xlane.f32.xlu0 %v210
  %v222 = vpop.xlane.xlu0 %221
  %223 = vadd.xlane.f32.xlu0 %v211
  %v224 = vpop.xlane.xlu0 %223
  %225 = vadd.xlane.f32.xlu0 %v212
  %v226 = vpop.xlane.xlu0 %225
  %227 = vadd.xlane.f32.xlu0 %v213
  %v228 = vpop.xlane.xlu0 %227
  %229 = vadd.xlane.f32.xlu0 %v214
  %v230 = vpop.xlane.xlu0 %229
  %s231 = sld [smem:[#allocation2]]
  %v232 = vstv %s231
  %v233 = vadd.f32 %v216, %v232
  %v234 = vadd.f32 %v218, %v232
  %v235 = vadd.f32 %v220, %v232
  %v236 = vadd.f32 %v222, %v232
  %v237 = vadd.f32 %v224, %v232
  %v238 = vadd.f32 %v226, %v232
  %v239 = vadd.f32 %v228, %v232
  %v240 = vadd.f32 %v230, %v232
  %v241 = vand.u32 2147483647, %v233
  %v242 = vand.u32 2147483647, %v234
  %v243 = vand.u32 2147483647, %v235
  %v244 = vand.u32 2147483647, %v236
  %v245 = vand.u32 2147483647, %v237
  %v246 = vand.u32 2147483647, %v238
  %v247 = vand.u32 2147483647, %v239
  %v248 = vand.u32 2147483647, %v240
  %v249 = vsub.f32 0.0, %v241
  %v250 = vsub.f32 0.0, %v242
  %v251 = vsub.f32 0.0, %v243
  %v252 = vsub.f32 0.0, %v244
  %v253 = vsub.f32 0.0, %v245
  %v254 = vsub.f32 0.0, %v246
  %v255 = vsub.f32 0.0, %v247
  %v256 = vsub.f32 0.0, %v248
  %v257 = vmul.f32 %v249, 1.442695
  %v258 = vpow.pop %v257
  %v259 = vmul.f32 %v250, 1.442695
  %v260 = vpow.pop %v259
  %v261 = vmul.f32 %v251, 1.442695
  %v262 = vpow.pop %v261
  %v263 = vmul.f32 %v252, 1.442695
  %v264 = vpow.pop %v263
  %v265 = vmul.f32 %v253, 1.442695
  %v266 = vpow.pop %v265
  %v267 = vmul.f32 %v254, 1.442695
  %v268 = vpow.pop %v267
  %v269 = vmul.f32 %v255, 1.442695
  %v270 = vpow.pop %v269
  %v271 = vmul.f32 %v256, 1.442695
  %v272 = vpow.pop %v271
  %v273 = vadd.f32 %v258, 1.0
  %v274 = vadd.f32 %v260, 1.0
  %v275 = vadd.f32 %v262, 1.0
  %v276 = vadd.f32 %v264, 1.0
  %v277 = vadd.f32 %v266, 1.0
  %v278 = vadd.f32 %v268, 1.0
  %v279 = vadd.f32 %v270, 1.0
  %v280 = vadd.f32 %v272, 1.0
  %v281 = vrcp.pop %v273
  %v282 = vrcp.pop %v274
  %v283 = vrcp.pop %v275
  %v284 = vrcp.pop %v276
  %v285 = vrcp.pop %v277
  %v286 = vrcp.pop %v278
  %v287 = vrcp.pop %v279
  %v288 = vrcp.pop %v280
  %v289 = vmin.f32 %v281, 1.0
  %v290 = vmin.f32 %v282, 1.0
  %v291 = vmin.f32 %v283, 1.0
  %v292 = vmin.f32 %v284, 1.0
  %v293 = vmin.f32 %v285, 1.0
  %v294 = vmin.f32 %v286, 1.0
  %v295 = vmin.f32 %v287, 1.0
  %v296 = vmin.f32 %v288, 1.0
  %vm297 = vcmp.ge.f32.partialorder %v233, 0.0
  %vm298 = vcmp.ge.f32.partialorder %v234, 0.0
  %vm299 = vcmp.ge.f32.partialorder %v235, 0.0
  %vm300 = vcmp.ge.f32.partialorder %v236, 0.0
  %vm301 = vcmp.ge.f32.partialorder %v237, 0.0
  %vm302 = vcmp.ge.f32.partialorder %v238, 0.0
  %vm303 = vcmp.ge.f32.partialorder %v239, 0.0
  %vm304 = vcmp.ge.f32.partialorder %v240, 0.0
  %v305 = vsub.f32 1.0, %v289
  %v306 = vsub.f32 1.0, %v290
  %v307 = vsub.f32 1.0, %v291
  %v308 = vsub.f32 1.0, %v292
  %v309 = vsub.f32 1.0, %v293
  %v310 = vsub.f32 1.0, %v294
  %v311 = vsub.f32 1.0, %v295
  %v312 = vsub.f32 1.0, %v296
  %v313 = vsel %vm297, %v289, %v305
  %v314 = vsel %vm298, %v290, %v306
  %v315 = vsel %vm299, %v291, %v307
  %v316 = vsel %vm300, %v292, %v308
  %v317 = vsel %vm301, %v293, %v309
  %v318 = vsel %vm302, %v294, %v310
  %v319 = vsel %vm303, %v295, %v311
  %v320 = vsel %vm304, %v296, %v312
  %v329 = vlaneseq
  %v330 = vand.u32 %v329, 127
  %v331 = vperm.slane %v313, %v330
  %v332 = vperm.slane %v314, %v330
  %v333 = vperm.slane %v315, %v330
  %v334 = vperm.slane %v316, %v330
  %v335 = vperm.slane %v317, %v330
  %v336 = vperm.slane %v318, %v330
  %v337 = vperm.slane %v319, %v330
  %v338 = vperm.slane %v320, %v330
  %vm339 = vcmask 1041409
  %v340 = vsel %vm339, %v332, %v331
  %vm341 = vcmask 1042434
  %v342 = vsel %vm341, %v333, %v340
  %vm343 = vcmask 1043459
  %v344 = vsel %vm343, %v334, %v342
  %vm345 = vcmask 1044484
  %v346 = vsel %vm345, %v335, %v344
  %vm347 = vcmask 1045509
  %v348 = vsel %vm347, %v336, %v346
  %vm349 = vcmask 1046534
  %v350 = vsel %vm349, %v337, %v348
  %vm351 = vcmask 1047559
  %v352 = vsel %vm351, %v338, %v350
  %vm354 = vcmask 64512
  %355 = vst.msk [vmem:[%s6] sm:$0xff] %vm354, %v352
  // Predicated region
  $region26: #{score_forward.1} parent=0 // pred_check
    _
  $region27: #{score_forward.1} parent=0 // pred_check_branch
    %357 = sbr.rel (0) target = $region29
  $region28: #{score_forward.1} parent=0 // pred_region
    _
  $region29: #{score_forward.1} parent=0 // pred_fallthru
    _
  // Predicated region
  $region30: #{score_forward.1} parent=0 // pred_check
    _
  $region31: #{score_forward.1} parent=0 // pred_check_branch
    %359 = sbr.rel (0) target = $region33
  $region32: #{score_forward.1} parent=0 // pred_region
    _
  $region33: #{score_forward.1} parent=0 // pred_fallthru
    _

</llo_original>
